<compile_context>
chip_gen: v7x
topology: tpu7x:2x2x1
jax: 0.10.0
libtpu: 0.0.40
codegen_flags: <defaults>
</compile_context>

<pallas_src>
import functools
import math

import jax
import jax.numpy as jnp
from jax import lax
from jax.experimental import pallas as pl
from jax.experimental.pallas import tpu as pltpu

LANE = 128  # TPU lane width; feature dims padded to a multiple of this (safe on all gens).


def _round_up(v, m):
    return ((v + m - 1) // m) * m


def _nbytes(shape, dtype):
    return math.prod(shape) * jnp.dtype(dtype).itemsize


def _ff_kernel(use_norm, d_hidden, d_hid_p, eps, *refs):
    if use_norm:
        x_ref, w1_ref, b1_ref, w2_ref, b2_ref, g_ref, be_ref, o_ref = refs
    else:
        x_ref, w1_ref, b1_ref, w2_ref, b2_ref, o_ref = refs

    # First projection: bf16 operands on the MXU (x cast in-kernel), f32 accumulation.
    x_bf = x_ref[...].astype(w1_ref.dtype)
    h = jnp.dot(x_bf, w1_ref[...], preferred_element_type=jnp.float32) + b1_ref[...]
    # SiLU in f32 (sigmoid goes to the EUP slot).
    h = h * jax.nn.sigmoid(h)

    if use_norm:
        # Centered two-pass LayerNorm statistics (numerically safer than E[h^2]-mean^2).
        # Padded hidden columns of h are exactly zero (zero-padded W1/b1), so the mean
        # with the true 1/d_hidden is exact; the centered term is masked so padded
        # columns do not pollute the variance.
        inv_d = 1.0 / d_hidden
        mean = jnp.sum(h, axis=-1, keepdims=True) * inv_d
        c = h - mean
        if d_hid_p != d_hidden:
            col = lax.broadcasted_iota(jnp.int32, c.shape, 1)
            c = jnp.where(col < d_hidden, c, 0.0)
        var = jnp.sum(c * c, axis=-1, keepdims=True) * inv_d
        h = c * lax.rsqrt(var + eps) * g_ref[...] + be_ref[...]   # padded gamma/beta are zero

    # TODO(synk): for very large d_hidden (>= ~4096) tile this stage over the hidden dim
    # (running sum/sumsq) instead of materializing the full (tm, d_hid_p) f32 temporaries.

    # Second projection: bf16 LHS on the MXU, f32 accumulation.
    out = jnp.dot(h.astype(w2_ref.dtype), w2_ref[...],
                  preferred_element_type=jnp.float32) + b2_ref[...]
    o_ref[...] = out.astype(o_ref.dtype)


def prepare_ff_params(w1, b1, w2, b2, gamma=None, beta=None, *, feature_align=LANE):
    """Pad feature dims to lane multiples and cast weights to bf16.

    Call ONCE at parameter-init time (not per forward): avoids the per-call HBM
    read+write round trip on all weights that the previous version incurred.
    """
    d_in, d_hidden = w1.shape
    d_out = w2.shape[1]
    d_in_p = _round_up(d_in, feature_align)
    d_hid_p = _round_up(d_hidden, feature_align)
    d_out_p = _round_up(d_out, feature_align)

    def pad2(a, shape, dtype):
        a = jnp.asarray(a, dtype)
        a = a.reshape(1, -1) if a.ndim == 1 else a
        if a.shape == shape:
            return a
        return jnp.zeros(shape, dtype).at[:a.shape[0], :a.shape[1]].set(a)

    params = {
        "w1": pad2(w1, (d_in_p, d_hid_p), jnp.bfloat16),
        "b1": pad2(b1, (1, d_hid_p), jnp.float32),
        "w2": pad2(w2, (d_hid_p, d_out_p), jnp.bfloat16),
        "b2": pad2(b2, (1, d_out_p), jnp.float32),
        "gamma": None if gamma is None else pad2(gamma, (1, d_hid_p), jnp.float32),
        "beta": None if beta is None else pad2(beta, (1, d_hid_p), jnp.float32),
        "dims": (d_in, d_hidden, d_out),
    }
    return params


def feedforward_pallas(x, params, *, use_norm, eps: float = 1e-5, tm: int = 256,
                       out_dtype=jnp.float32):
    """x: [N, d_in] f32. params: output of prepare_ff_params. Returns [N, d_out]."""
    d_in, d_hidden, d_out = params["dims"]
    w1_p, b1_p, w2_p, b2_p = params["w1"], params["b1"], params["w2"], params["b2"]
    d_in_p, d_hid_p = w1_p.shape
    d_out_p = w2_p.shape[1]

    N = x.shape[0]
    assert x.shape == (N, d_in)

    # Row tile: multiple of 16 (bf16 packed sublanes), large enough to feed the MXU and
    # amortize the ~0.35us/step grid overhead, yet capped so there are >= 2 grid steps
    # whenever N allows it (both v7x TensorCores get work via dimension_semantics).
    tm = max(16, min(tm, _round_up(N, 16)))
    if N > 16:
        tm = min(tm, _round_up(pl.cdiv(N, 2), 16))
    n_p = _round_up(N, tm)

    # x is read from HBM exactly once (f32); the bf16 cast happens inside the kernel.
    # Padding is only materialized when the row/feature extent actually requires it.
    if (N, d_in) == (n_p, d_in_p):
        x_in = x
    else:
        x_in = jnp.zeros((n_p, d_in_p), x.dtype).at[:N, :d_in].set(x)

    def resident_spec(shape):
        # Grid-invariant block: single-buffered (no overlap benefit from double-buffering).
        return pl.BlockSpec(shape, lambda i: (0, 0), pipeline_mode=pl.Buffered(1))

    in_specs = [
        pl.BlockSpec((tm, d_in_p), lambda i: (i, 0)),     # x row tile (streamed, double-buffered)
        resident_spec((d_in_p, d_hid_p)),                 # W1 (bf16, resident)
        resident_spec((1, d_hid_p)),                      # b1
        resident_spec((d_hid_p, d_out_p)),                # W2 (bf16, resident)
        resident_spec((1, d_out_p)),                      # b2
    ]
    args = [x_in, w1_p, b1_p, w2_p, b2_p]
    if use_norm:
        in_specs += [resident_spec((1, d_hid_p)),         # LayerNorm gamma
                     resident_spec((1, d_hid_p))]         # LayerNorm beta
        args += [params["gamma"], params["beta"]]

    # VMEM budget derived from the actual buffers (not a flat constant).
    resident_bytes = (_nbytes((d_in_p, d_hid_p), jnp.bfloat16)
                      + _nbytes((d_hid_p, d_out_p), jnp.bfloat16)
                      + _nbytes((1, d_hid_p), jnp.float32)
                      + _nbytes((1, d_out_p), jnp.float32)
                      + (2 * _nbytes((1, d_hid_p), jnp.float32) if use_norm else 0))
    streamed_bytes = 2 * (_nbytes((tm, d_in_p), x.dtype) + _nbytes((tm, d_out_p), out_dtype))
    temp_bytes = 4 * _nbytes((tm, d_hid_p), jnp.float32)   # h, centered/sq, bf16 copy, slack
    vmem_limit = int(min(max(2 * (resident_bytes + streamed_bytes + temp_bytes),
                             32 * 1024 * 1024),
                         56 * 1024 * 1024))                 # stays inside v7x's 64 MiB per-TC VMEM

    kernel = functools.partial(_ff_kernel, use_norm, d_hidden, d_hid_p, eps)

    # TODO(synk): when bf16 W1+W2 plus the (tm, d_hid_p) f32 temps exceed this budget
    # (very large d_hidden/d_out, esp. on v7x), switch to a K-tiled grid axis with an
    # f32 accumulator scratch instead of fully resident weights.
    out_p = pl.pallas_call(
        kernel,
        out_shape=jax.ShapeDtypeStruct((n_p, d_out_p), out_dtype),
        grid_spec=pltpu.PrefetchScalarGridSpec(
            num_scalar_prefetch=0,
            grid=(n_p // tm,),
            in_specs=in_specs,
            out_specs=pl.BlockSpec((tm, d_out_p), lambda i: (i, 0)),
        ),
        compiler_params=pltpu.CompilerParams(
            dimension_semantics=("parallel",),   # row tiles shard across v7x's 2 TensorCores
            vmem_limit_bytes=vmem_limit,
        ),
    )(*args)

    if (n_p, d_out_p) != (N, d_out):
        out_p = out_p[:N, :d_out]
    return out_p


def make_params(key, d_in, d_hidden, d_out):
    """Deterministic init matching reset_parameters():
       kaiming_normal_(nonlinearity='relu') => std = sqrt(2 / fan_in), biases zero."""
    k1, k2 = jax.random.split(key, 2)
    # PyTorch weight shape is [out, in]; kaiming fan_in = in. Store transposed [in, out].
    w1 = jax.random.normal(k1, (d_in, d_hidden), jnp.float32) * jnp.sqrt(2.0 / d_in)
    b1 = jnp.zeros((1, d_hidden), jnp.float32)
    w2 = jax.random.normal(k2, (d_hidden, d_out), jnp.float32) * jnp.sqrt(2.0 / d_hidden)
    b2 = jnp.zeros((1, d_out), jnp.float32)
    gamma = jnp.ones((1, d_hidden), jnp.float32)   # LayerNorm weight
    beta = jnp.zeros((1, d_hidden), jnp.float32)   # LayerNorm bias
    return w1, b1, w2, b2, gamma, beta


def feedforward_ref(x, w1, b1, w2, b2, gamma, beta, *, use_norm, eps=1e-5):
    """Reference mirroring the kernel's mixed precision (bf16 matmul operands,
    f32 accumulation, f32 SiLU/LayerNorm)."""
    h = jnp.dot(x.astype(jnp.bfloat16), w1.astype(jnp.bfloat16),
                preferred_element_type=jnp.float32) + b1.reshape(1, -1)
    h = h * jax.nn.sigmoid(h)
    if use_norm:
        mean = jnp.mean(h, axis=-1, keepdims=True)
        var = jnp.mean((h - mean) ** 2, axis=-1, keepdims=True)
        h = (h - mean) * lax.rsqrt(var + eps) * gamma.reshape(1, -1) + beta.reshape(1, -1)
    return jnp.dot(h.astype(jnp.bfloat16), w2.astype(jnp.bfloat16),
                   preferred_element_type=jnp.float32) + b2.reshape(1, -1)


if __name__ == "__main__":
    key = jax.random.PRNGKey(0)
    kx, kp = jax.random.split(key)

    # Small shapes implied by the module defaults: d_hidden = 4*d_in, d_out = d_in.
    N, d_in = 16, 32
    d_hidden, d_out = 4 * d_in, d_in

    x = jax.random.normal(kx, (N, d_in), jnp.float32)
    w1, b1, w2, b2, gamma, beta = make_params(kp, d_in, d_hidden, d_out)

    # Pad / cast weights ONCE at init time (not per forward call).
    params = prepare_ff_params(w1, b1, w2, b2, gamma, beta)

    ok = True
    for use_norm in (False, True):   # cover both norm=False (default) and norm=True
        out = feedforward_pallas(x, params, use_norm=use_norm)
        out = jax.block_until_ready(out)
        ref = feedforward_ref(x, w1, b1, w2, b2, gamma, beta, use_norm=use_norm)
        ok &= bool(jnp.allclose(out, ref, atol=5e-3, rtol=5e-3))

    print("KERNEL_OK" if ok else "KERNEL_MISMATCH")
</pallas_src>

<mosaic_0001>
module attributes {stable_mosaic.version = 11 : i64} {
  func.func @_ff_kernel(%arg0: i32, %arg1: memref<16x128xf32, #tpu.memory_space<vmem>>, %arg2: memref<128x128xbf16, #tpu.memory_space<vmem>>, %arg3: memref<1x128xf32, #tpu.memory_space<vmem>>, %arg4: memref<128x128xbf16, #tpu.memory_space<vmem>>, %arg5: memref<1x128xf32, #tpu.memory_space<vmem>>, %arg6: memref<16x128xf32, #tpu.memory_space<vmem>>) attributes {dimension_semantics = [#tpu.dimension_semantics<parallel>], iteration_bounds = array<i64: 1>, scalar_prefetch = 0 : i64, scratch_operands = 0 : i64, tpu.core_type = #tpu.core_type<tc>, window_params = [{transform_indices = @transform_0, window_bounds = array<i64: 16, 128>}, {pipeline_mode = #tpu.pipeline_mode<synchronous>, transform_indices = @transform_1, window_bounds = array<i64: 128, 128>}, {pipeline_mode = #tpu.pipeline_mode<synchronous>, transform_indices = @transform_2, window_bounds = array<i64: 1, 128>}, {pipeline_mode = #tpu.pipeline_mode<synchronous>, transform_indices = @transform_3, window_bounds = array<i64: 128, 128>}, {pipeline_mode = #tpu.pipeline_mode<synchronous>, transform_indices = @transform_4, window_bounds = array<i64: 1, 128>}, {transform_indices = @transform_5, window_bounds = array<i64: 16, 128>}]} {
    %c0 = arith.constant 0 : index
    %c0_0 = arith.constant 0 : index
    %0 = vector.load %arg1[%c0, %c0_0] : memref<16x128xf32, #tpu.memory_space<vmem>>, vector<16x128xf32>
    %1 = arith.truncf %0 : vector<16x128xf32> to vector<16x128xbf16>
    %c0_1 = arith.constant 0 : index
    %c0_2 = arith.constant 0 : index
    %2 = vector.load %arg2[%c0_1, %c0_2] : memref<128x128xbf16, #tpu.memory_space<vmem>>, vector<128x128xbf16>
    %cst = arith.constant dense<0.000000e+00> : vector<16x128xf32>
    %3 = tpu.matmul %1, %2, %cst {dimension_numbers = #tpu.dot_dimension_numbers<[1], [0], [0], [1], [0, 0, 1, 1], [], []>} : vector<16x128xbf16>, vector<128x128xbf16>, vector<16x128xf32> -> vector<16x128xf32>
    %c0_3 = arith.constant 0 : index
    %c0_4 = arith.constant 0 : index
    %4 = vector.load %arg3[%c0_3, %c0_4] : memref<1x128xf32, #tpu.memory_space<vmem>>, vector<1x128xf32>
    %5 = vector.broadcast %4 : vector<1x128xf32> to vector<16x128xf32>
    %6 = arith.addf %3, %5 : vector<16x128xf32>
    %7 = arith.negf %6 : vector<16x128xf32>
    %8 = math.exp %7 : vector<16x128xf32>
    %cst_5 = arith.constant 1.000000e+00 : f32
    %9 = vector.broadcast %cst_5 : f32 to vector<16x128xf32>
    %10 = arith.addf %9, %8 : vector<16x128xf32>
    %11 = arith.divf %9, %10 : vector<16x128xf32>
    %12 = arith.mulf %6, %11 : vector<16x128xf32>
    %13 = arith.truncf %12 : vector<16x128xf32> to vector<16x128xbf16>
    %c0_6 = arith.constant 0 : index
    %c0_7 = arith.constant 0 : index
    %14 = vector.load %arg4[%c0_6, %c0_7] : memref<128x128xbf16, #tpu.memory_space<vmem>>, vector<128x128xbf16>
    %cst_8 = arith.constant dense<0.000000e+00> : vector<16x128xf32>
    %15 = tpu.matmul %13, %14, %cst_8 {dimension_numbers = #tpu.dot_dimension_numbers<[1], [0], [0], [1], [0, 0, 1, 1], [], []>} : vector<16x128xbf16>, vector<128x128xbf16>, vector<16x128xf32> -> vector<16x128xf32>
    %c0_9 = arith.constant 0 : index
    %c0_10 = arith.constant 0 : index
    %16 = vector.load %arg5[%c0_9, %c0_10] : memref<1x128xf32, #tpu.memory_space<vmem>>, vector<1x128xf32>
    %17 = vector.broadcast %16 : vector<1x128xf32> to vector<16x128xf32>
    %18 = arith.addf %15, %17 : vector<16x128xf32>
    %c0_11 = arith.constant 0 : index
    %c0_12 = arith.constant 0 : index
    %19 = vector.load %arg6[%c0_11, %c0_12] : memref<16x128xf32, #tpu.memory_space<vmem>>, vector<16x128xf32>
    tpu.vector_store %arg6[%c0_11, %c0_12], %18 {strides = array<i32>} : memref<16x128xf32, #tpu.memory_space<vmem>>, vector<16x128xf32>,
    return
  }
  func.func @transform_0(%arg0: i32) -> (i32, i32) {
    %c0_i32 = arith.constant 0 : i32
    %c0_i32_0 = arith.constant 0 : i32
    return %arg0, %c0_i32 : i32, i32
  }
  func.func @transform_1(%arg0: i32) -> (i32, i32) {
    %c0_i32 = arith.constant 0 : i32
    %c0_i32_0 = arith.constant 0 : i32
    %c0_i32_1 = arith.constant 0 : i32
    return %c0_i32, %c0_i32_0 : i32, i32
  }
  func.func @transform_2(%arg0: i32) -> (i32, i32) {
    %c0_i32 = arith.constant 0 : i32
    %c0_i32_0 = arith.constant 0 : i32
    %c0_i32_1 = arith.constant 0 : i32
    return %c0_i32, %c0_i32_0 : i32, i32
  }
  func.func @transform_3(%arg0: i32) -> (i32, i32) {
    %c0_i32 = arith.constant 0 : i32
    %c0_i32_0 = arith.constant 0 : i32
    %c0_i32_1 = arith.constant 0 : i32
    return %c0_i32, %c0_i32_0 : i32, i32
  }
  func.func @transform_4(%arg0: i32) -> (i32, i32) {
    %c0_i32 = arith.constant 0 : i32
    %c0_i32_0 = arith.constant 0 : i32
    %c0_i32_1 = arith.constant 0 : i32
    return %c0_i32, %c0_i32_0 : i32, i32
  }
  func.func @transform_5(%arg0: i32) -> (i32, i32) {
    %c0_i32 = arith.constant 0 : i32
    %c0_i32_0 = arith.constant 0 : i32
    return %arg0, %c0_i32 : i32, i32
  }
}

</mosaic_0001>

<llo_original>
// kernel: tpu_custom_call.1
$region0: #{tpu_custom_call.1}
  #allocation0 [shape = 'u32[]', space=smem, size = 0x4, offset = 0x4, fixed_abs, tag = 'smem constant byte address 0x4 - core index']
  #allocation1 [shape = 'u32[144,128]{1,0:T(1,128)}', space=vmem, size = 0x12000, scoped, tag = 'internal scratch']
  %s0 = inlined_call_operand.hbm [shape: f32[16,128], index: 0, kind: input, shape index: {}]
  %s1 = inlined_call_operand.hbm [shape: bf16[128,128], index: 1, kind: input, shape index: {}]
  %s2 = inlined_call_operand.vmem [shape: f32[1,128], index: 2, kind: input, shape index: {}]
  %s3 = inlined_call_operand.hbm [shape: bf16[128,128], index: 3, kind: input, shape index: {}]
  %s4 = inlined_call_operand.vmem [shape: f32[1,128], index: 4, kind: input, shape index: {}]
  %s5 = inlined_call_operand.hbm [shape: f32[16,128], index: 5, kind: output, shape index: {}]
  %s6 = sld [smem:[#allocation0]]
  $region42: #{tpu_custom_call.1} parent=0
    _
  %s8 = ssub.s32 1, %s6
  %s9 = scalar_select 0, %s8, %s6
  $region1: #{tpu_custom_call.1} parent=0
    #allocation2 [shape = 'u8[8192]{0}', space=vmem, size = 0x2000, scoped, tag = 'input window, operand 0, single buffered']
    #allocation3 [shape = 's32[1]{0}', space=sflag, size = 0x4, scoped, tag = 'scoped memory for tpu_custom_call.1']
    #allocation4 [shape = 's32[1]{0}', space=sflag, size = 0x4, scoped, tag = 'scoped memory for tpu_custom_call.1']
    #allocation5 [shape = 'u8[32768]{0}', space=vmem, size = 0x8000, scoped, tag = 'input window, operand 1, single buffered']
    #allocation6 [shape = 's32[1]{0}', space=sflag, size = 0x4, scoped, tag = 'scoped memory for tpu_custom_call.1']
    #allocation7 [shape = 'u8[32768]{0}', space=vmem, size = 0x8000, scoped, tag = 'input window, operand 3, single buffered']
    #allocation8 [shape = 'u8[8192]{0}', space=vmem, size = 0x2000, scoped, tag = 'output window, operand 0, single buffered']
    %10 = vsyncpa [#allocation3], 0
    %11 = vsyncpa [#allocation6], 0
    %12 = vsyncpa [#allocation4], 0
    // Predicated region
    $region2: #{tpu_custom_call.1} parent=1 // pred_check
      _
    $region3: #{tpu_custom_call.1} parent=1 // pred_check_branch
      %14 = sbr.rel (0) target = $region5
    $region4: #{tpu_custom_call.1} parent=1 // pred_region
      %s16 = ssub.s32 256, 256
      %17 = vsyncadd [#allocation3], %s16
      %s18 = sshll.u32 [#allocation2], 4
      %s19 = int_to_ptr.vmem [resolvable:$true] %s18
      %24 = dma.hbm_to_vmem [thread:$0]  %s0, 256, %s19, [#allocation3], 128, 128, 8
    $region5: #{tpu_custom_call.1} parent=1 // pred_fallthru
      _
    // Predicated region
    $region6: #{tpu_custom_call.1} parent=1 // pred_check
      _
    $region7: #{tpu_custom_call.1} parent=1 // pred_check_branch
      %26 = sbr.rel (0) target = $region9
    $region8: #{tpu_custom_call.1} parent=1 // pred_region
      %s28 = ssub.s32 1024, 1024
      %29 = vsyncadd [#allocation6], %s28
      %s30 = sshll.u32 [#allocation5], 4
      %s31 = int_to_ptr.vmem [resolvable:$true] %s30
      %36 = dma.hbm_to_vmem [thread:$0]  %s1, 1024, %s31, [#allocation6], 64, 64, 4
    $region9: #{tpu_custom_call.1} parent=1 // pred_fallthru
      _
    // Predicated region
    $region10: #{tpu_custom_call.1} parent=1 // pred_check
      _
    $region11: #{tpu_custom_call.1} parent=1 // pred_check_branch
      %38 = sbr.rel (0) target = $region13
    $region12: #{tpu_custom_call.1} parent=1 // pred_region
      _
    $region13: #{tpu_custom_call.1} parent=1 // pred_fallthru
      _
    // Predicated region
    $region14: #{tpu_custom_call.1} parent=1 // pred_check
      _
    $region15: #{tpu_custom_call.1} parent=1 // pred_check_branch
      %40 = sbr.rel (0) target = $region17
    $region16: #{tpu_custom_call.1} parent=1 // pred_region
      %s42 = ssub.s32 1024, 1024
      %43 = vsyncadd [#allocation6], %s42
      %s44 = sshll.u32 [#allocation7], 4
      %s45 = int_to_ptr.vmem [resolvable:$true] %s44
      %50 = dma.hbm_to_vmem [thread:$0]  %s3, 1024, %s45, [#allocation6], 64, 64, 4
    $region17: #{tpu_custom_call.1} parent=1 // pred_fallthru
      _
    // Predicated region
    $region18: #{tpu_custom_call.1} parent=1 // pred_check
      _
    $region19: #{tpu_custom_call.1} parent=1 // pred_check_branch
      %52 = sbr.rel (0) target = $region21
    $region20: #{tpu_custom_call.1} parent=1 // pred_region
      _
    $region21: #{tpu_custom_call.1} parent=1 // pred_fallthru
      _
    // Predicated region
    $region22: #{tpu_custom_call.1} parent=1 // pred_check
      _
    $region23: #{tpu_custom_call.1} parent=1 // pred_check_branch
      %54 = sbr.rel (0) target = $region25
    $region24: #{tpu_custom_call.1} parent=1 // pred_region
      %55 = dma.done [#allocation3], 256
    $region25: #{tpu_custom_call.1} parent=1 // pred_fallthru
      _
    // Predicated region
    $region26: #{tpu_custom_call.1} parent=1 // pred_check
      _
    $region27: #{tpu_custom_call.1} parent=1 // pred_check_branch
      %57 = sbr.rel (0) target = $region29
    $region28: #{tpu_custom_call.1} parent=1 // pred_region
      %58 = dma.done [#allocation6], 1024
    $region29: #{tpu_custom_call.1} parent=1 // pred_fallthru
      _
    // Predicated region
    $region30: #{tpu_custom_call.1} parent=1 // pred_check
      _
    $region31: #{tpu_custom_call.1} parent=1 // pred_check_branch
      %60 = sbr.rel (0) target = $region33
    $region32: #{tpu_custom_call.1} parent=1 // pred_region
      %61 = dma.done [#allocation6], 1024
    $region33: #{tpu_custom_call.1} parent=1 // pred_fallthru
      _
    %v63 = vld [vmem:[#allocation2] sm:$0xff]
    %v64 = vld [vmem:[#allocation2 + $0x8] sm:$0xff]
    %v65 = vpack.c.bf16 %v64, %v63
    %v66 = vld [vmem:[#allocation5] sm:$0xf]
    %v67 = vld [vmem:[#allocation5 + $0x4] sm:$0xf]
    %v68 = vld [vmem:[#allocation5 + $0x8] sm:$0xf]
    %v69 = vld [vmem:[#allocation5 + $0xc] sm:$0xf]
    %v70 = vld [vmem:[#allocation5 + $0x10] sm:$0xf]
    %v71 = vld [vmem:[#allocation5 + $0x14] sm:$0xf]
    %v72 = vld [vmem:[#allocation5 + $0x18] sm:$0xf]
    %v73 = vld [vmem:[#allocation5 + $0x1c] sm:$0xf]
    %v74 = vld [vmem:[#allocation5 + $0x20] sm:$0xf]
    %v75 = vld [vmem:[#allocation5 + $0x24] sm:$0xf]
    %v76 = vld [vmem:[#allocation5 + $0x28] sm:$0xf]
    %v77 = vld [vmem:[#allocation5 + $0x2c] sm:$0xf]
    %v78 = vld [vmem:[#allocation5 + $0x30] sm:$0xf]
    %v79 = vld [vmem:[#allocation5 + $0x34] sm:$0xf]
    %v80 = vld [vmem:[#allocation5 + $0x38] sm:$0xf]
    %v81 = vld [vmem:[#allocation5 + $0x3c] sm:$0xf]
    %v82 = vld [vmem:[%s2] sm:$0x1]
    %v84 = vlaneseq
    %v85 = vshrl.u32 %v84, 7
    %v86 = vsub.s32 0, %v85
    %v87 = vrot.slane %v82, %v86
    %v105 = vunpack.c.l.b16 %v66
    %v106 = vunpack.c.l.b16 %v67
    %v107 = vunpack.c.l.b16 %v68
    %v108 = vunpack.c.l.b16 %v69
    %v109 = vunpack.c.l.b16 %v70
    %v110 = vunpack.c.l.b16 %v71
    %v111 = vunpack.c.l.b16 %v72
    %v112 = vunpack.c.l.b16 %v73
    %v113 = vunpack.c.l.b16 %v74
    %v114 = vunpack.c.l.b16 %v75
    %v115 = vunpack.c.l.b16 %v76
    %v116 = vunpack.c.l.b16 %v77
    %v117 = vunpack.c.l.b16 %v78
    %v118 = vunpack.c.l.b16 %v79
    %v119 = vunpack.c.l.b16 %v80
    %v120 = vunpack.c.l.b16 %v81
    %v121 = vpack.c.b16 %v106, %v105
    %v122 = vpack.c.b16 %v108, %v107
    %v123 = vpack.c.b16 %v110, %v109
    %v124 = vpack.c.b16 %v112, %v111
    %v125 = vpack.c.b16 %v114, %v113
    %v126 = vpack.c.b16 %v116, %v115
    %v127 = vpack.c.b16 %v118, %v117
    %v128 = vpack.c.b16 %v120, %v119
    %137 = vmatprep.subr.bf16.mxu0 0
    %138 = vmatpush1.bf16.msra.mxu0 %v121
    %139 = vmatprep.subr.bf16.mxu0 0
    %140 = vmatpush1.bf16.msra.mxu0 %v122
    %141 = vmatprep.subr.bf16.mxu0 0
    %142 = vmatpush1.bf16.msra.mxu0 %v123
    %143 = vmatprep.subr.bf16.mxu0 0
    %144 = vmatpush1.bf16.msra.mxu0 %v124
    %145 = vmatprep.subr.bf16.mxu0 0
    %146 = vmatpush1.bf16.msra.mxu0 %v125
    %147 = vmatprep.subr.bf16.mxu0 0
    %148 = vmatpush1.bf16.msra.mxu0 %v126
    %149 = vmatprep.subr.bf16.mxu0 0
    %150 = vmatpush1.bf16.msra.mxu0 %v127
    %151 = vmatprep.subr.bf16.mxu0 0
    %152 = vmatpush1.bf16.msra.mxu0 %v128
    %153 = vmatprep.subr.bf16.mxu0 0
    %154 = vmatpush1.bf16.msra.mxu0 0
    %155 = vmatprep.subr.bf16.mxu0 0
    %156 = vmatpush1.bf16.msra.mxu0 0
    %157 = vmatprep.subr.bf16.mxu0 0
    %158 = vmatpush1.bf16.msra.mxu0 0
    %159 = vmatprep.subr.bf16.mxu0 0
    %160 = vmatpush1.bf16.msra.mxu0 0
    %161 = vmatprep.subr.bf16.mxu0 0
    %162 = vmatpush1.bf16.msra.mxu0 0
    %163 = vmatprep.subr.bf16.mxu0 0
    %164 = vmatpush1.bf16.msra.mxu0 0
    %165 = vmatprep.subr.bf16.mxu0 0
    %166 = vmatpush1.bf16.msra.mxu0 0
    %167 = vmatprep.subr.bf16.mxu0 0
    %168 = vmatpush1.bf16.msra.mxu0 0
    %169 = vmatprep.mubr.bf16.mxu0 0
    %170 = vmatmul.mubr.bf16.gmra.mrb[0].mxu0 %v65
    %v171 = vpop.f32.mrb[0].mxu0
    %v172 = vadd.f32 %v87, %v171
    %v173 = vpop.f32.mrb[0].mxu0
    %v174 = vpop.f32.mrb[0].mxu0
    %v175 = vadd.f32 %v87, %v174
    %v176 = vpop.f32.mrb[0].mxu0
    %177 = vdwg.mxu0
    %v178 = vxor.u32 %v172, 2147483648
    %v179 = vxor.u32 %v175, 2147483648
    %v180 = vmul.f32 %v178, 1.442695
    %v181 = vpow.pop %v180
    %v182 = vmul.f32 %v179, 1.442695
    %v183 = vpow.pop %v182
    %v184 = vadd.f32 %v181, 1.0
    %v185 = vadd.f32 %v183, 1.0
    %v186 = vrcp.pop %v184
    %v187 = vmul.f32 1.0, %v186
    %v188 = vrcp.pop %v185
    %v189 = vmul.f32 1.0, %v188
    %v190 = vmul.f32 %v172, %v187
    %v191 = vmul.f32 %v175, %v189
    %v192 = vpack.c.bf16 %v191, %v190
    %v193 = vld [vmem:[#allocation7] sm:$0xf]
    %v194 = vld [vmem:[#allocation7 + $0x4] sm:$0xf]
    %v195 = vld [vmem:[#allocation7 + $0x8] sm:$0xf]
    %v196 = vld [vmem:[#allocation7 + $0xc] sm:$0xf]
    %v197 = vld [vmem:[#allocation7 + $0x10] sm:$0xf]
    %v198 = vld [vmem:[#allocation7 + $0x14] sm:$0xf]
    %v199 = vld [vmem:[#allocation7 + $0x18] sm:$0xf]
    %v200 = vld [vmem:[#allocation7 + $0x1c] sm:$0xf]
    %v201 = vld [vmem:[#allocation7 + $0x20] sm:$0xf]
    %v202 = vld [vmem:[#allocation7 + $0x24] sm:$0xf]
    %v203 = vld [vmem:[#allocation7 + $0x28] sm:$0xf]
    %v204 = vld [vmem:[#allocation7 + $0x2c] sm:$0xf]
    %v205 = vld [vmem:[#allocation7 + $0x30] sm:$0xf]
    %v206 = vld [vmem:[#allocation7 + $0x34] sm:$0xf]
    %v207 = vld [vmem:[#allocation7 + $0x38] sm:$0xf]
    %v208 = vld [vmem:[#allocation7 + $0x3c] sm:$0xf]
    %v209 = vld [vmem:[%s4] sm:$0x1]
    %v211 = vlaneseq
    %v212 = vshrl.u32 %v211, 7
    %v213 = vsub.s32 0, %v212
    %v214 = vrot.slane %v209, %v213
    %v232 = vunpack.c.l.b16 %v193
    %v233 = vunpack.c.l.b16 %v194
    %v234 = vunpack.c.l.b16 %v195
    %v235 = vunpack.c.l.b16 %v196
    %v236 = vunpack.c.l.b16 %v197
    %v237 = vunpack.c.l.b16 %v198
    %v238 = vunpack.c.l.b16 %v199
    %v239 = vunpack.c.l.b16 %v200
    %v240 = vunpack.c.l.b16 %v201
    %v241 = vunpack.c.l.b16 %v202
    %v242 = vunpack.c.l.b16 %v203
    %v243 = vunpack.c.l.b16 %v204
    %v244 = vunpack.c.l.b16 %v205
    %v245 = vunpack.c.l.b16 %v206
    %v246 = vunpack.c.l.b16 %v207
    %v247 = vunpack.c.l.b16 %v208
    %v248 = vpack.c.b16 %v233, %v232
    %v249 = vpack.c.b16 %v235, %v234
    %v250 = vpack.c.b16 %v237, %v236
    %v251 = vpack.c.b16 %v239, %v238
    %v252 = vpack.c.b16 %v241, %v240
    %v253 = vpack.c.b16 %v243, %v242
    %v254 = vpack.c.b16 %v245, %v244
    %v255 = vpack.c.b16 %v247, %v246
    %264 = vmatprep.subr.bf16.mxu0 0
    %265 = vmatpush1.bf16.msra.mxu0 %v248
    %266 = vmatprep.subr.bf16.mxu0 0
    %267 = vmatpush1.bf16.msra.mxu0 %v249
    %268 = vmatprep.subr.bf16.mxu0 0
    %269 = vmatpush1.bf16.msra.mxu0 %v250
    %270 = vmatprep.subr.bf16.mxu0 0
    %271 = vmatpush1.bf16.msra.mxu0 %v251
    %272 = vmatprep.subr.bf16.mxu0 0
    %273 = vmatpush1.bf16.msra.mxu0 %v252
    %274 = vmatprep.subr.bf16.mxu0 0
    %275 = vmatpush1.bf16.msra.mxu0 %v253
    %276 = vmatprep.subr.bf16.mxu0 0
    %277 = vmatpush1.bf16.msra.mxu0 %v254
    %278 = vmatprep.subr.bf16.mxu0 0
    %279 = vmatpush1.bf16.msra.mxu0 %v255
    %280 = vmatprep.subr.bf16.mxu0 0
    %281 = vmatpush1.bf16.msra.mxu0 0
    %282 = vmatprep.subr.bf16.mxu0 0
    %283 = vmatpush1.bf16.msra.mxu0 0
    %284 = vmatprep.subr.bf16.mxu0 0
    %285 = vmatpush1.bf16.msra.mxu0 0
    %286 = vmatprep.subr.bf16.mxu0 0
    %287 = vmatpush1.bf16.msra.mxu0 0
    %288 = vmatprep.subr.bf16.mxu0 0
    %289 = vmatpush1.bf16.msra.mxu0 0
    %290 = vmatprep.subr.bf16.mxu0 0
    %291 = vmatpush1.bf16.msra.mxu0 0
    %292 = vmatprep.subr.bf16.mxu0 0
    %293 = vmatpush1.bf16.msra.mxu0 0
    %294 = vmatprep.subr.bf16.mxu0 0
    %295 = vmatpush1.bf16.msra.mxu0 0
    %296 = vmatprep.mubr.bf16.mxu0 0
    %297 = vmatmul.mubr.bf16.gmra.mrb[0].mxu0 %v192
    %v298 = vpop.f32.mrb[0].mxu0
    %v299 = vadd.f32 %v214, %v298
    %v300 = vpop.f32.mrb[0].mxu0
    %v301 = vpop.f32.mrb[0].mxu0
    %v302 = vadd.f32 %v214, %v301
    %v303 = vpop.f32.mrb[0].mxu0
    %304 = vdwg.mxu0
    %305 = vst [vmem:[#allocation8] sm:$0xff] %v299
    %306 = vst [vmem:[#allocation8 + $0x8] sm:$0xff] %v302
    // Predicated region
    $region34: #{tpu_custom_call.1} parent=1 // pred_check
      _
    $region35: #{tpu_custom_call.1} parent=1 // pred_check_branch
      %308 = sbr.rel (0) target = $region37
    $region36: #{tpu_custom_call.1} parent=1 // pred_region
      %s310 = ssub.s32 256, 256
      %311 = vsyncadd [#allocation4], %s310
      %s312 = sshll.u32 [#allocation8], 4
      %s313 = int_to_ptr.vmem [resolvable:$true] %s312
      %318 = dma.vmem_to_hbm [thread:$0]  %s313, 256, %s5, [#allocation4], 128, 128, 8
    $region37: #{tpu_custom_call.1} parent=1 // pred_fallthru
      _
    // Predicated region
    $region38: #{tpu_custom_call.1} parent=1 // pred_check
      _
    $region39: #{tpu_custom_call.1} parent=1 // pred_check_branch
      %320 = sbr.rel (0) target = $region41
    $region40: #{tpu_custom_call.1} parent=1 // pred_region
      %321 = dma.done [#allocation4], 256
    $region41: #{tpu_custom_call.1} parent=1 // pred_fallthru
      _
    %322 = vsyncpa [#allocation3], 1
    %323 = vsyncpa [#allocation6], 1
    %324 = vsyncpa [#allocation4], 1

</llo_original>
